<compile_context>
chip_gen: v6e
topology: v6e:2x2x1
jax: 0.10.0
libtpu: 0.0.40
codegen_flags: <defaults>
</compile_context>

<pallas_src>
import functools

import jax
import jax.numpy as jnp
from jax.experimental import pallas as pl
from jax.experimental.pallas import tpu as pltpu


def _pick_tile(n, candidates):
    """First candidate that divides n; falls back to the full extent."""
    for c in candidates:
        if c <= n and n % c == 0:
            return c
    return n


def _round_up(n, m):
    return ((n + m - 1) // m) * m


def _default_tiles():
    """Per-generation defaults (block_m, block_h):
    v5e: 128x128 MXU + low HBM bw -> (128, 128); v6e/v7x: 256-wide MXU -> (256, 256)."""
    try:
        kind = jax.devices()[0].device_kind.lower()
    except Exception:
        kind = ""
    if "v5 lite" in kind or "v5e" in kind or "v5lite" in kind:
        return 128, 128
    return 256, 256


def _expert_vmem_bytes(block_m, dim, th):
    """Rough VMEM budget: double-buffered inputs/outputs + f32 accumulator scratch."""
    w13 = dim * (2 * th) * 2          # bf16 fused up-projection slab
    w2 = th * dim * 2                 # bf16 down-projection slab
    r = block_m * dim * 2             # bf16 routed activations
    o = block_m * dim * 2             # bf16 output block
    acc = block_m * dim * 4           # f32 accumulator scratch
    return 2 * (w13 + w2 + r + o) + acc


# ----------------------------------------------------------------------------
# Router kernel: fp32 gate matmul + softmax + iterative top-k (one token tile)
# ----------------------------------------------------------------------------
def _router_kernel(x_ref, wg_ref, scores_ref, idx_ref, *, top_k):
    x = x_ref[...].astype(jnp.float32)                               # (TR, D)
    wg = wg_ref[...]                                                 # (D, E) f32
    logits = jnp.dot(x, wg, preferred_element_type=jnp.float32)      # (TR, E)

    m = jnp.max(logits, axis=-1, keepdims=True)
    ex = jnp.exp(logits - m)
    # Reciprocal on the EUP (approx).  Expert *selection* below uses `logits`,
    # so the approximation only scales the score values uniformly per row and
    # can never change which experts are picked.
    inv_denom = pl.reciprocal(jnp.sum(ex, axis=-1, keepdims=True), approx=True)

    tr, num_e = logits.shape
    lane = jax.lax.broadcasted_iota(jnp.int32, (tr, num_e), 1)
    kcol = jax.lax.broadcasted_iota(jnp.int32, (tr, top_k), 1)

    remaining = logits
    scores = jnp.zeros((tr, top_k), jnp.float32)
    indices = jnp.zeros((tr, top_k), jnp.int32)
    for k in range(top_k):                      # top_k small & static -> unrolled
        mx = jnp.max(remaining, axis=-1, keepdims=True)
        is_max = remaining >= mx
        # first (lowest-index) argmax: matches torch.topk tie-breaking
        first = jnp.min(jnp.where(is_max, lane, num_e), axis=-1, keepdims=True)
        sel = lane == first
        sc = jnp.sum(jnp.where(sel, ex, 0.0), axis=-1, keepdims=True) * inv_denom
        scores = jnp.where(kcol == k, sc, scores)
        indices = jnp.where(kcol == k, first, indices)
        remaining = jnp.where(sel, -jnp.inf, remaining)

    # NOTE: (tr, top_k) stores are lane-sparse (masked vst); negligible here
    # because the router is bound on reading x, so we keep the simple layout.
    scores_ref[...] = scores
    idx_ref[...] = indices


def router_forward(x2d, gate_w, *, top_k):
    """Pallas router: returns (top_scores, top_idx), each (T, top_k)."""
    T, dim = x2d.shape
    num_experts = gate_w.shape[0]
    assert top_k <= num_experts, "top_k must not exceed num_experts"
    gate_wt = jnp.transpose(gate_w).astype(jnp.float32)              # (dim, E)
    tr = _pick_tile(T, (512, 256, 128, 64, 32, 16, 8))
    kernel = functools.partial(_router_kernel, top_k=top_k)
    top_scores, top_idx = pl.pallas_call(
        kernel,
        out_shape=(jax.ShapeDtypeStruct((T, top_k), jnp.float32),
                   jax.ShapeDtypeStruct((T, top_k), jnp.int32)),
        grid=(T // tr,),
        in_specs=[pl.BlockSpec((tr, dim), lambda i: (i, 0)),
                  pl.BlockSpec((dim, num_experts), lambda i: (0, 0))],
        out_specs=(pl.BlockSpec((tr, top_k), lambda i: (i, 0)),
                   pl.BlockSpec((tr, top_k), lambda i: (i, 0))),
        compiler_params=pltpu.CompilerParams(
            dimension_semantics=("parallel",)),
    )(x2d, gate_wt)                                                  # x in native dtype
    return top_scores, top_idx


# ----------------------------------------------------------------------------
# Grouped expert kernel: one (row-block, hidden-block) step of SwiGLU experts
# ----------------------------------------------------------------------------
def _experts_kernel(eid_ref, vld_ref, r_ref, w13_ref, w2_ref, o_ref, acc_ref, *, th):
    """eid_ref: SMEM (num_blocks,) int32 block->expert table (scalar-prefetched)
    vld_ref: SMEM (num_blocks,) int32 valid rows per block (0 => pure padding)
    r_ref:   (BLOCK_M, dim) bf16 pre-scaled routed activations
    w13_ref: (1, dim, 2*th) bf16 fused [w1 tile | w3 tile] for this expert
    w2_ref:  (1, th, dim) bf16 down-projection tile for this expert
    o_ref:   (BLOCK_M, dim) bf16 output, written once at the last hidden block
    acc_ref: (BLOCK_M, dim) f32 VMEM accumulator scratch."""
    b = pl.program_id(0)
    j = pl.program_id(1)
    n_h = pl.num_programs(1)

    @pl.when(j == 0)
    def _():
        acc_ref[...] = jnp.zeros_like(acc_ref)

    @pl.when(vld_ref[b] > 0)                      # skip SwiGLU on all-padding blocks
    def _():
        r = r_ref[...]                                                    # bf16
        h13 = jnp.dot(r, w13_ref[0], preferred_element_type=jnp.float32)  # (BM, 2*th)
        h1 = h13[:, :th]
        h3 = h13[:, th:]
        h = (h1 * jax.nn.sigmoid(h1)) * h3                                # silu(h1)*h3
        acc_ref[...] += jnp.dot(h.astype(jnp.bfloat16), w2_ref[0],
                                preferred_element_type=jnp.float32)

    @pl.when(j == n_h - 1)
    def _():
        o_ref[...] = acc_ref[...].astype(o_ref.dtype)


# ----------------------------------------------------------------------------
# Python wrapper (router -> group by expert -> grouped experts -> scatter-add)
# ----------------------------------------------------------------------------
def moe_forward(x, gate_w, w1, w2, w3, *, top_k, block_m=None, block_h=None):
    """x: (bs, slen, dim); gate_w: (E, dim); w1/w3: (E, dim, H); w2: (E, H, dim)."""
    bs, slen, dim = x.shape
    num_experts, _, hidden = w1.shape
    T = bs * slen
    x2d = x.reshape(T, dim)

    dm, dh = _default_tiles()
    block_m = dm if block_m is None else block_m
    block_h = dh if block_h is None else block_h

    # ------------------------------ router ----------------------------------
    top_scores, top_idx = router_forward(x2d, gate_w, top_k=top_k)   # (T, K)

    # -------------- group routed slots by expert (index plumbing) -----------
    tk = T * top_k
    slot_expert = top_idx.reshape(-1).astype(jnp.int32)              # (T*K,)
    slot_token = jnp.arange(tk, dtype=jnp.int32) // top_k
    slot_score = top_scores.reshape(-1)

    order = jnp.argsort(slot_expert, stable=True)
    sorted_expert = slot_expert[order]
    sorted_token = slot_token[order]
    sorted_score = slot_score[order]

    counts = jnp.bincount(slot_expert, length=num_experts).astype(jnp.int32)
    aligned = _round_up(counts, block_m)                             # padded group sizes
    zero = jnp.zeros((1,), jnp.int32)
    group_start = jnp.concatenate([zero, jnp.cumsum(aligned)[:-1]])
    raw_start = jnp.concatenate([zero, jnp.cumsum(counts)[:-1]])
    rank = jnp.arange(tk, dtype=jnp.int32) - raw_start[sorted_expert]
    position = group_start[sorted_expert] + rank                     # row in padded buffer

    # static upper bound on padded rows (each non-empty group pads < block_m rows)
    padded_rows = _round_up(tk, block_m) + num_experts * block_m
    num_blocks = padded_rows // block_m

    # block -> expert table + per-block valid-row counts (both to SMEM via
    # scalar prefetch).  Unused tail blocks map to the last expert with 0
    # valid rows -> compute skipped, zeros written.
    blocks_per_e = (aligned // block_m).astype(jnp.int32)
    cum_blocks = jnp.cumsum(blocks_per_e)
    total_used_blocks = cum_blocks[-1]
    block_ids = jnp.arange(num_blocks, dtype=jnp.int32)
    block_expert = jnp.sum(
        (block_ids[:, None] >= cum_blocks[None, :]).astype(jnp.int32), axis=1)
    block_expert = jnp.minimum(block_expert, num_experts - 1).astype(jnp.int32)
    block_local = block_ids - (cum_blocks[block_expert] - blocks_per_e[block_expert])
    block_valid = jnp.clip(counts[block_expert] - block_local * block_m, 0, block_m)
    block_valid = jnp.where(block_ids < total_used_blocks, block_valid, 0).astype(jnp.int32)

    # gather + scale in native dtype (score BEFORE expert, torchtune convention),
    # then bf16 for the MXU
    routed = (x2d[sorted_token]
              * sorted_score[:, None].astype(x2d.dtype)).astype(jnp.bfloat16)
    routed_padded = jnp.zeros((padded_rows, dim), jnp.bfloat16).at[position].set(routed)

    # --------------------------- grouped experts ----------------------------
    th = _pick_tile(hidden, (block_h, 512, 256, 128))                # hidden tile
    n_h = hidden // th
    # Fuse w1|w3 per hidden tile so a single matmul computes both up-projections.
    # In a real model this re-layout would be done once at init, not per call.
    w13 = jnp.concatenate(
        [w1.reshape(num_experts, dim, n_h, th),
         w3.reshape(num_experts, dim, n_h, th)], axis=-1,
    ).reshape(num_experts, dim, 2 * hidden).astype(jnp.bfloat16)
    w2b = w2.astype(jnp.bfloat16)

    vmem_need = _expert_vmem_bytes(block_m, dim, th)
    vmem_limit = int(min(max(2 * vmem_need + (4 << 20), 32 << 20), 100 << 20))

    kernel = functools.partial(_experts_kernel, th=th)
    expert_out = pl.pallas_call(
        kernel,
        out_shape=jax.ShapeDtypeStruct((padded_rows, dim), jnp.bfloat16),
        grid_spec=pltpu.PrefetchScalarGridSpec(
            num_scalar_prefetch=2,
            grid=(num_blocks, n_h),
            in_specs=[
                pl.BlockSpec((block_m, dim), lambda b, j, eid, vld: (b, 0)),
                pl.BlockSpec((1, dim, 2 * th), lambda b, j, eid, vld: (eid[b], 0, j)),
                pl.BlockSpec((1, th, dim), lambda b, j, eid, vld: (eid[b], j, 0)),
            ],
            out_specs=pl.BlockSpec((block_m, dim), lambda b, j, eid, vld: (b, 0)),
            scratch_shapes=[pltpu.VMEM((block_m, dim), jnp.float32)],
        ),
        compiler_params=pltpu.CompilerParams(
            dimension_semantics=("parallel", "arbitrary"),
            vmem_limit_bytes=vmem_limit,
        ),
    )(block_expert, block_valid, routed_padded, w13, w2b)

    # ----------------------- scatter-add back to tokens ---------------------
    out2d = jnp.zeros((T, dim), jnp.float32).at[sorted_token].add(
        expert_out[position].astype(jnp.float32))
    # TODO(synk): shared_expert is None in this config; if present, its output
    # would replace the zeros initializer above before the scatter_add.
    return out2d.reshape(bs, slen, dim).astype(x.dtype)


# ----------------------------------------------------------------------------
# Pure-JAX reference for the expert/combine path, given routing decisions.
# Routing is passed in (instead of recomputed) so the test is insensitive to
# fp tie-breaking inside the router; the router is checked separately by value.
# ----------------------------------------------------------------------------
def moe_reference(x, w1, w2, w3, top_scores, top_idx):
    bs, slen, dim = x.shape
    T = bs * slen
    x2d = x.reshape(T, dim).astype(jnp.float32)
    out = jnp.zeros((T, dim), jnp.float32)
    for k in range(top_scores.shape[1]):
        e = top_idx[:, k]                                            # (T,)
        routed = x2d * top_scores[:, k:k + 1]                        # scale before expert
        h = jax.nn.silu(jnp.einsum("td,tdh->th", routed, w1[e])) * \
            jnp.einsum("td,tdh->th", routed, w3[e])
        out = out + jnp.einsum("th,thd->td", h, w2[e])               # scatter_add
    return out.reshape(bs, slen, dim)


if __name__ == "__main__":
    bs, slen, dim = 2, 96, 128
    hidden = 256
    num_experts = 8
    top_k = 2

    key = jax.random.PRNGKey(0)
    kx, kg, k1, k2, k3 = jax.random.split(key, 5)
    x = jax.random.normal(kx, (bs, slen, dim), jnp.float32)
    gate_w = jax.random.normal(kg, (num_experts, dim), jnp.float32) * 0.1   # nn.Linear(dim,E).weight
    w1 = jax.random.normal(k1, (num_experts, dim, hidden), jnp.float32) * 0.05
    w2 = jax.random.normal(k2, (num_experts, hidden, dim), jnp.float32) * 0.05
    w3 = jax.random.normal(k3, (num_experts, dim, hidden), jnp.float32) * 0.05

    out = moe_forward(x, gate_w, w1, w2, w3, top_k=top_k)
    out = jax.block_until_ready(out)
    assert out.shape == (bs, slen, dim)

    # --- check 1: router scores match fp32 softmax top-k *values* -----------
    T = bs * slen
    x2d = x.reshape(T, dim)
    top_scores, top_idx = router_forward(x2d, gate_w, top_k=top_k)
    probs_ref = jax.nn.softmax(
        jnp.dot(x2d, gate_w.T, precision=jax.lax.Precision.HIGHEST).astype(jnp.float32),
        axis=-1)
    ref_vals, _ = jax.lax.top_k(probs_ref, top_k)
    assert bool(jnp.all(top_idx >= 0)) and bool(jnp.all(top_idx < num_experts))
    assert jnp.allclose(top_scores, ref_vals, atol=2e-2, rtol=2e-2), \
        "router top-k score mismatch"

    # --- check 2: full forward matches reference expert math on same routing ---
    ref = moe_reference(x, w1, w2, w3, top_scores, top_idx)
    err = float(jnp.max(jnp.abs(out - ref)))
    assert jnp.allclose(out, ref, atol=2e-2, rtol=2e-2), \
        f"Pallas MoE output mismatch vs reference (max abs err {err})"

    print("KERNEL_OK")
</pallas_src>

<mosaic_0001>
module attributes {stable_mosaic.version = 11 : i64} {
  func.func @_router_kernel(%arg0: i32, %arg1: memref<64x128xf32, #tpu.memory_space<vmem>>, %arg2: memref<128x8xf32, #tpu.memory_space<vmem>>, %arg3: memref<64x2xf32, #tpu.memory_space<vmem>>, %arg4: memref<64x2xi32, #tpu.memory_space<vmem>>) attributes {dimension_semantics = [#tpu.dimension_semantics<parallel>], iteration_bounds = array<i64: 3>, scalar_prefetch = 0 : i64, scratch_operands = 0 : i64, tpu.core_type = #tpu.core_type<tc>, window_params = [{transform_indices = @transform_0, window_bounds = array<i64: 64, 128>}, {pipeline_mode = #tpu.pipeline_mode<synchronous>, transform_indices = @transform_1, window_bounds = array<i64: 128, 8>}, {transform_indices = @transform_2, window_bounds = array<i64: 64, 2>}, {transform_indices = @transform_3, window_bounds = array<i64: 64, 2>}]} {
    %c0 = arith.constant 0 : index
    %c0_0 = arith.constant 0 : index
    %0 = vector.load %arg1[%c0, %c0_0] : memref<64x128xf32, #tpu.memory_space<vmem>>, vector<64x128xf32>
    %c0_1 = arith.constant 0 : index
    %c0_2 = arith.constant 0 : index
    %1 = vector.load %arg2[%c0_1, %c0_2] : memref<128x8xf32, #tpu.memory_space<vmem>>, vector<128x8xf32>
    %cst = arith.constant dense<0.000000e+00> : vector<64x8xf32>
    %2 = tpu.matmul %0, %1, %cst {dimension_numbers = #tpu.dot_dimension_numbers<[1], [0], [0], [1], [0, 0, 1, 1], [], []>} : vector<64x128xf32>, vector<128x8xf32>, vector<64x8xf32> -> vector<64x8xf32>
    %cst_3 = arith.constant dense<0xFF800000> : vector<64xf32>
    %3 = vector.multi_reduction <maximumf>, %2, %cst_3 [1] : vector<64x8xf32> to vector<64xf32>
    %4 = vector.shape_cast %3 : vector<64xf32> to vector<64x1xf32>
    %5 = vector.broadcast %4 : vector<64x1xf32> to vector<64x8xf32>
    %6 = arith.subf %2, %5 : vector<64x8xf32>
    %7 = math.exp %6 : vector<64x8xf32>
    %cst_4 = arith.constant dense<0.000000e+00> : vector<64xf32>
    %8 = vector.multi_reduction <add>, %7, %cst_4 [1] : vector<64x8xf32> to vector<64xf32>
    %9 = vector.shape_cast %8 : vector<64xf32> to vector<64x1xf32>
    %10 = tpu.reciprocal %9 {approx = true} : vector<64x1xf32> -> vector<64x1xf32>
    %11 = tpu.iota {dimensions = array<i32: 1>} : vector<64x8xi32>
    %12 = tpu.iota {dimensions = array<i32: 1>} : vector<64x2xi32>
    %cst_5 = arith.constant 0.000000e+00 : f32
    %13 = vector.broadcast %cst_5 : f32 to vector<64x2xf32>
    %c0_i32 = arith.constant 0 : i32
    %14 = vector.broadcast %c0_i32 : i32 to vector<64x2xi32>
    %cst_6 = arith.constant dense<0xFF800000> : vector<64xf32>
    %15 = vector.multi_reduction <maximumf>, %2, %cst_6 [1] : vector<64x8xf32> to vector<64xf32>
    %16 = vector.shape_cast %15 : vector<64xf32> to vector<64x1xf32>
    %17 = vector.broadcast %16 : vector<64x1xf32> to vector<64x8xf32>
    %18 = arith.cmpf oge, %2, %17 : vector<64x8xf32>
    %c8_i32 = arith.constant 8 : i32
    %19 = vector.broadcast %c8_i32 : i32 to vector<64x8xi32>
    %20 = arith.select %18, %11, %19 : vector<64x8xi1>, vector<64x8xi32>
    %cst_7 = arith.constant dense<2147483647> : vector<64xi32>
    %21 = vector.multi_reduction <minsi>, %20, %cst_7 [1] : vector<64x8xi32> to vector<64xi32>
    %22 = vector.shape_cast %21 : vector<64xi32> to vector<64x1xi32>
    %23 = vector.broadcast %22 : vector<64x1xi32> to vector<64x8xi32>
    %24 = arith.cmpi eq, %11, %23 : vector<64x8xi32>
    %cst_8 = arith.constant 0.000000e+00 : f32
    %25 = vector.broadcast %cst_8 : f32 to vector<64x8xf32>
    %26 = arith.select %24, %7, %25 : vector<64x8xi1>, vector<64x8xf32>
    %cst_9 = arith.constant dense<0.000000e+00> : vector<64xf32>
    %27 = vector.multi_reduction <add>, %26, %cst_9 [1] : vector<64x8xf32> to vector<64xf32>
    %28 = vector.shape_cast %27 : vector<64xf32> to vector<64x1xf32>
    %29 = arith.mulf %28, %10 : vector<64x1xf32>
    %c0_i32_10 = arith.constant 0 : i32
    %30 = vector.broadcast %c0_i32_10 : i32 to vector<64x2xi32>
    %31 = arith.cmpi eq, %12, %30 : vector<64x2xi32>
    %32 = vector.shape_cast %29 : vector<64x1xf32> to vector<64x1xf32>
    %33 = vector.broadcast %32 : vector<64x1xf32> to vector<64x2xf32>
    %34 = arith.select %31, %33, %13 : vector<64x2xi1>, vector<64x2xf32>
    %c0_i32_11 = arith.constant 0 : i32
    %35 = vector.broadcast %c0_i32_11 : i32 to vector<64x2xi32>
    %36 = arith.cmpi eq, %12, %35 : vector<64x2xi32>
    %37 = vector.shape_cast %22 : vector<64x1xi32> to vector<64x1xi32>
    %38 = vector.broadcast %37 : vector<64x1xi32> to vector<64x2xi32>
    %39 = arith.select %36, %38, %14 : vector<64x2xi1>, vector<64x2xi32>
    %cst_12 = arith.constant 0xFF800000 : f32
    %40 = vector.broadcast %cst_12 : f32 to vector<64x8xf32>
    %41 = arith.select %24, %40, %2 : vector<64x8xi1>, vector<64x8xf32>
    %cst_13 = arith.constant dense<0xFF800000> : vector<64xf32>
    %42 = vector.multi_reduction <maximumf>, %41, %cst_13 [1] : vector<64x8xf32> to vector<64xf32>
    %43 = vector.shape_cast %42 : vector<64xf32> to vector<64x1xf32>
    %44 = vector.broadcast %43 : vector<64x1xf32> to vector<64x8xf32>
    %45 = arith.cmpf oge, %41, %44 : vector<64x8xf32>
    %c8_i32_14 = arith.constant 8 : i32
    %46 = vector.broadcast %c8_i32_14 : i32 to vector<64x8xi32>
    %47 = arith.select %45, %11, %46 : vector<64x8xi1>, vector<64x8xi32>
    %cst_15 = arith.constant dense<2147483647> : vector<64xi32>
    %48 = vector.multi_reduction <minsi>, %47, %cst_15 [1] : vector<64x8xi32> to vector<64xi32>
    %49 = vector.shape_cast %48 : vector<64xi32> to vector<64x1xi32>
    %50 = vector.broadcast %49 : vector<64x1xi32> to vector<64x8xi32>
    %51 = arith.cmpi eq, %11, %50 : vector<64x8xi32>
    %cst_16 = arith.constant 0.000000e+00 : f32
    %52 = vector.broadcast %cst_16 : f32 to vector<64x8xf32>
    %53 = arith.select %51, %7, %52 : vector<64x8xi1>, vector<64x8xf32>
    %cst_17 = arith.constant dense<0.000000e+00> : vector<64xf32>
    %54 = vector.multi_reduction <add>, %53, %cst_17 [1] : vector<64x8xf32> to vector<64xf32>
    %55 = vector.shape_cast %54 : vector<64xf32> to vector<64x1xf32>
    %56 = arith.mulf %55, %10 : vector<64x1xf32>
    %c1_i32 = arith.constant 1 : i32
    %57 = vector.broadcast %c1_i32 : i32 to vector<64x2xi32>
    %58 = arith.cmpi eq, %12, %57 : vector<64x2xi32>
    %59 = vector.shape_cast %56 : vector<64x1xf32> to vector<64x1xf32>
    %60 = vector.broadcast %59 : vector<64x1xf32> to vector<64x2xf32>
    %61 = arith.select %58, %60, %34 : vector<64x2xi1>, vector<64x2xf32>
    %c1_i32_18 = arith.constant 1 : i32
    %62 = vector.broadcast %c1_i32_18 : i32 to vector<64x2xi32>
    %63 = arith.cmpi eq, %12, %62 : vector<64x2xi32>
    %64 = vector.shape_cast %49 : vector<64x1xi32> to vector<64x1xi32>
    %65 = vector.broadcast %64 : vector<64x1xi32> to vector<64x2xi32>
    %66 = arith.select %63, %65, %39 : vector<64x2xi1>, vector<64x2xi32>
    %c0_19 = arith.constant 0 : index
    %c0_20 = arith.constant 0 : index
    %67 = vector.load %arg3[%c0_19, %c0_20] : memref<64x2xf32, #tpu.memory_space<vmem>>, vector<64x2xf32>
    tpu.vector_store %arg3[%c0_19, %c0_20], %61 {strides = array<i32>} : memref<64x2xf32, #tpu.memory_space<vmem>>, vector<64x2xf32>,
    %c0_21 = arith.constant 0 : index
    %c0_22 = arith.constant 0 : index
    %68 = vector.load %arg4[%c0_21, %c0_22] : memref<64x2xi32, #tpu.memory_space<vmem>>, vector<64x2xi32>
    tpu.vector_store %arg4[%c0_21, %c0_22], %66 {strides = array<i32>} : memref<64x2xi32, #tpu.memory_space<vmem>>, vector<64x2xi32>,
    return
  }
  func.func @transform_0(%arg0: i32) -> (i32, i32) {
    %c0_i32 = arith.constant 0 : i32
    %c0_i32_0 = arith.constant 0 : i32
    return %arg0, %c0_i32 : i32, i32
  }
  func.func @transform_1(%arg0: i32) -> (i32, i32) {
    %c0_i32 = arith.constant 0 : i32
    %c0_i32_0 = arith.constant 0 : i32
    %c0_i32_1 = arith.constant 0 : i32
    return %c0_i32, %c0_i32_0 : i32, i32
  }
  func.func @transform_2(%arg0: i32) -> (i32, i32) {
    %c0_i32 = arith.constant 0 : i32
    %c0_i32_0 = arith.constant 0 : i32
    return %arg0, %c0_i32 : i32, i32
  }
  func.func @transform_3(%arg0: i32) -> (i32, i32) {
    %c0_i32 = arith.constant 0 : i32
    %c0_i32_0 = arith.constant 0 : i32
    return %arg0, %c0_i32 : i32, i32
  }
}

</mosaic_0001>

<llo_original>
// kernel: tpu_custom_call.1
$region0: #{tpu_custom_call.1}
  #allocation0 [shape = 'u32[]', space=smem, size = 0x4, offset = 0x4, fixed_abs, tag = 'smem constant byte address 0x4 - core index']
  #allocation1 [shape = 'u32[144,128]{1,0:T(1,128)}', space=vmem, size = 0x12000, scoped, tag = 'internal scratch']
  %s0 = inlined_call_operand.hbm [shape: f32[192,128], index: 0, kind: input, shape index: {}]
  %s1 = inlined_call_operand.vmem [shape: f32[128,8], index: 1, kind: input, shape index: {}]
  %s2 = inlined_call_operand.vmem [shape: f32[192,2], index: 2, kind: output, shape index: {0}]
  %s3 = inlined_call_operand.vmem [shape: s32[192,2], index: 3, kind: output, shape index: {1}]
  %4 = xla_tuple %s2, %s3
  %s5 = sld [smem:[#allocation0]]
  $region53: #{tpu_custom_call.1} parent=0
    _
  %s7 = ssub.s32 1, %s5
  %s8 = scalar_select 0, %s7, %s5
  $region1: #{tpu_custom_call.1} parent=0
    #allocation2 [shape = 'u8[65536]{0}', space=vmem, size = 0x10000, scoped, tag = 'input window, operand 0']
    #allocation3 [shape = 's32[2]{0}', space=sflag, size = 0x8, scoped, tag = 'scoped memory for tpu_custom_call.1']
    %9 = vsyncpa [#allocation3], 0
    %s10 = scalar_lea.sflag [#allocation3], 1
    %11 = vsyncpa %s10, 0
    loop: start=0, step=1, limit=5
    $region2: #{tpu_custom_call.1} parent=1 // loop_pre_header
      _
    $region3: #{tpu_custom_call.1} parent=1 // loop_header
      %s13 = sphi 0, %s17
      %p14 = scmp.ge.s32.totalorder %s13, 5
      %s23 = sphi 0, %s25
      %s26 = sphi 0, %s23
      %s27 = sphi 0, %s26
      %s43 = sphi 0, %s27
      %s47 = sphi 0, %s47
      %s49 = sphi 0, %s47
      %s50 = sphi 0, %s49
      %s64 = sphi 0, %s50
      %s70 = sphi 0, %s72
      %s73 = sphi 0, %s70
      %s74 = sphi 0, %s73
      %s90 = sphi 0, %s74
      %s96 = sphi 0, %s98
      %s99 = sphi 0, %s96
      %s100 = sphi 0, %s99
      %s116 = sphi 0, %s100
    $region4: #{tpu_custom_call.1} parent=1 // loop_header_branch
      %16 = sbr.rel (%p14) target = $region8
    $region5: #{tpu_custom_call.1} parent=1 // loop_body
      %s18 = ssub.s32 %s13, 1
      %s19 = ssub.s32 %s13, 2
      %s20 = sadd.s32 %s13, 1
      %s21 = ssub.s32 %s13, %s20
      %p22 = scmp.eq.s32.totalorder %s21, 0
      %s24 = sadd.s32 %s23, 1
      %s25 = scalar_select %p22, %s23, %s24
      %p28 = pneg %p22
      %p29 = scmp.eq.s32.totalorder %s13, 2
      %p30 = por %p28, %p29
      %p31 = scmp.ne.s32.totalorder %s23, %s26
      %p32 = scmp.eq.s32.totalorder %s13, 0
      %p33 = por %p31, %p32
      %p34 = scmp.ne.s32.totalorder %s23, %s26
      %p35 = scmp.eq.s32.totalorder %s18, 2
      %p36 = por %p34, %p35
      %p37 = scmp.ne.s32.totalorder %s26, %s27
      %p38 = scmp.eq.s32.totalorder %s18, 0
      %p39 = por %p37, %p38
      %p40 = scmp.ne.s32.totalorder %s26, %s27
      %p41 = scmp.eq.s32.totalorder %s19, 2
      %p42 = por %p40, %p41
      %p44 = scmp.ne.s32.totalorder %s27, %s43
      %p45 = scmp.eq.s32.totalorder %s19, 0
      %p46 = por %p44, %p45
      %s48 = sadd.s32 %s47, 1
      %p51 = scmp.eq.s32.totalorder %s13, 2
      %p52 = scmp.ne.s32.totalorder %s47, %s49
      %p53 = scmp.eq.s32.totalorder %s13, 0
      %p54 = por %p52, %p53
      %p55 = scmp.ne.s32.totalorder %s47, %s49
      %p56 = scmp.eq.s32.totalorder %s18, 2
      %p57 = por %p55, %p56
      %p58 = scmp.ne.s32.totalorder %s49, %s50
      %p59 = scmp.eq.s32.totalorder %s18, 0
      %p60 = por %p58, %p59
      %p61 = scmp.ne.s32.totalorder %s49, %s50
      %p62 = scmp.eq.s32.totalorder %s19, 2
      %p63 = por %p61, %p62
      %p65 = scmp.ne.s32.totalorder %s50, %s64
      %p66 = scmp.eq.s32.totalorder %s19, 0
      %p67 = por %p65, %p66
      %s68 = ssub.s32 %s13, %s20
      %p69 = scmp.eq.s32.totalorder %s68, 0
      %s71 = sadd.s32 %s70, 1
      %s72 = scalar_select %p69, %s70, %s71
      %p75 = pneg %p69
      %p76 = scmp.eq.s32.totalorder %s13, 2
      %p77 = por %p75, %p76
      %p78 = scmp.ne.s32.totalorder %s70, %s73
      %p79 = scmp.eq.s32.totalorder %s13, 0
      %p80 = por %p78, %p79
      %p81 = scmp.ne.s32.totalorder %s70, %s73
      %p82 = scmp.eq.s32.totalorder %s18, 2
      %p83 = por %p81, %p82
      %p84 = scmp.ne.s32.totalorder %s73, %s74
      %p85 = scmp.eq.s32.totalorder %s18, 0
      %p86 = por %p84, %p85
      %p87 = scmp.ne.s32.totalorder %s73, %s74
      %p88 = scmp.eq.s32.totalorder %s19, 2
      %p89 = por %p87, %p88
      %p91 = scmp.ne.s32.totalorder %s74, %s90
      %p92 = scmp.eq.s32.totalorder %s19, 0
      %p93 = por %p91, %p92
      %s94 = ssub.s32 %s13, %s20
      %p95 = scmp.eq.s32.totalorder %s94, 0
      %s97 = sadd.s32 %s96, 1
      %s98 = scalar_select %p95, %s96, %s97
      %p101 = pneg %p95
      %p102 = scmp.eq.s32.totalorder %s13, 2
      %p103 = por %p101, %p102
      %p104 = scmp.ne.s32.totalorder %s96, %s99
      %p105 = scmp.eq.s32.totalorder %s13, 0
      %p106 = por %p104, %p105
      %p107 = scmp.ne.s32.totalorder %s96, %s99
      %p108 = scmp.eq.s32.totalorder %s18, 2
      %p109 = por %p107, %p108
      %p110 = scmp.ne.s32.totalorder %s99, %s100
      %p111 = scmp.eq.s32.totalorder %s18, 0
      %p112 = por %p110, %p111
      %p113 = scmp.ne.s32.totalorder %s99, %s100
      %p114 = scmp.eq.s32.totalorder %s19, 2
      %p115 = por %p113, %p114
      %p117 = scmp.ne.s32.totalorder %s100, %s116
      %p118 = scmp.eq.s32.totalorder %s19, 0
      %p119 = por %p117, %p118
      %p120 = scmp.le.s32.totalorder 1, %s13
      %p121 = scmp.lt.s32.totalorder %s13, 4
      %p122 = pnand %p120, %p121
      %p123 = pneg %p122
      // Predicated region
      $region9: #{tpu_custom_call.1} parent=5 // pred_check
        _
      $region10: #{tpu_custom_call.1} parent=5 // pred_check_branch
        %125 = sbr.rel (%p122) target = $region12
      $region11: #{tpu_custom_call.1} parent=5 // pred_region
        %s126 = ssub.s32 %s13, 1
        // Predicated region
        $region13: #{tpu_custom_call.1} parent=11 // pred_check
          %p127 = pneg %p60
        $region14: #{tpu_custom_call.1} parent=11 // pred_check_branch
          %129 = sbr.rel (%p127) target = $region16
        $region15: #{tpu_custom_call.1} parent=11 // pred_region
          _
        $region16: #{tpu_custom_call.1} parent=11 // pred_fallthru
          _
      $region12: #{tpu_custom_call.1} parent=5 // pred_fallthru
        _
      %p130 = scmp.lt.s32.totalorder %s13, 3
      // Predicated region
      $region17: #{tpu_custom_call.1} parent=5 // pred_check
        %p131 = pneg %p130
      $region18: #{tpu_custom_call.1} parent=5 // pred_check_branch
        %133 = sbr.rel (%p131) target = $region20
      $region19: #{tpu_custom_call.1} parent=5 // pred_region
        // Predicated region
        $region21: #{tpu_custom_call.1} parent=19 // pred_check
          %p134 = pneg %p33
        $region22: #{tpu_custom_call.1} parent=19 // pred_check_branch
          %136 = sbr.rel (%p134) target = $region24
        $region23: #{tpu_custom_call.1} parent=19 // pred_region
          %s137 = sand.u32 %s23, 1
          %s138 = scalar_lea.sflag [#allocation3], %s137
          %s139 = sand.u32 %s23, 1
          %s140 = smul.addr %s139, 64
          %s141 = scalar_lea.vmem [#allocation2], %s140
          %s142 = smul.u32 8, %s13
          %s144 = ssub.s32 1024, 1024
          %145 = vsyncadd %s138, %s144
          %s146 = smul.addr %s142, 128
          %s147 = scalar_lea.hbm %s0, %s146
          %s148 = sshll.u32 %s141, 4
          %s149 = int_to_ptr.vmem [resolvable:$true] %s148
          %154 = dma.hbm_to_vmem [thread:$0]  %s147, 1024, %s149, %s138, 128, 128, 8
        $region24: #{tpu_custom_call.1} parent=19 // pred_fallthru
          _
      $region20: #{tpu_custom_call.1} parent=5 // pred_fallthru
        _
      %p155 = scmp.le.s32.totalorder 1, %s13
      %p156 = scmp.lt.s32.totalorder %s13, 4
      %p157 = pnand %p155, %p156
      %p158 = pneg %p157
      // Predicated region
      $region25: #{tpu_custom_call.1} parent=5 // pred_check
        _
      $region26: #{tpu_custom_call.1} parent=5 // pred_check_branch
        %160 = sbr.rel (%p157) target = $region28
      $region27: #{tpu_custom_call.1} parent=5 // pred_region
        %s161 = ssub.s32 %s13, 1
        %s162 = sand.u32 %s26, 1
        %s163 = scalar_lea.sflag [#allocation3], %s162
        %s164 = sand.u32 %s26, 1
        %s165 = smul.addr %s164, 64
        %s166 = scalar_lea.vmem [#allocation2], %s165
        // Predicated region
        $region29: #{tpu_custom_call.1} parent=27 // pred_check
          %p167 = pneg %p39
        $region30: #{tpu_custom_call.1} parent=27 // pred_check_branch
          %169 = sbr.rel (%p167) target = $region32
        $region31: #{tpu_custom_call.1} parent=27 // pred_region
          %170 = dma.done %s163, 1024
        $region32: #{tpu_custom_call.1} parent=27 // pred_fallthru
          _
        %s171 = sand.u32 %s26, 1
        %s172 = scalar_lea.sflag [#allocation3], %s171
        %s173 = sand.u32 %s26, 1
        %s174 = smul.addr %s173, 64
        %s175 = scalar_lea.vmem [#allocation2], %s174
        %p176 = pneg %p39
        %p177 = pneg %p36
        %p178 = pneg %p60
        %p179 = pneg %p57
        %p180 = pneg %p86
        %p181 = pneg %p83
        %s182 = smul.u32 8, %s18
        %p183 = scmp.lt.s32.totalorder %s182, 23
        %s184 = scalar_select %p183, %s182, 23
        %s185 = smul.addr %s184, 8
        %s186 = scalar_lea.vmem %s2, %s185
        %p187 = pneg %p112
        %p188 = pneg %p109
        %s189 = smul.u32 8, %s18
        %p190 = scmp.lt.s32.totalorder %s189, 23
        %s191 = scalar_select %p190, %s189, 23
        %s192 = smul.addr %s191, 8
        %s193 = scalar_lea.vmem %s3, %s192
        %s194 = smul.u32 8, %s18
        %s195 = smul.u32 8, %s18
        %p196 = scmp.lt.s32.totalorder %s195, 23
        %s197 = scalar_select %p196, %s195, 23
        %s198 = smul.addr %s197, 8
        %s199 = scalar_lea.vmem %s2, %s198
        %s200 = smul.u32 8, %s18
        %s201 = smul.u32 8, %s18
        %p202 = scmp.lt.s32.totalorder %s201, 23
        %s203 = scalar_select %p202, %s201, 23
        %s204 = smul.addr %s203, 8
        %s205 = scalar_lea.vmem %s3, %s204
        %s206 = smul.u32 8, %s18
        %v207 = vld [vmem:[%s166] sm:$0xff]
        %v208 = vld [vmem:[%s166 + $0x8] sm:$0xff]
        %v209 = vld [vmem:[%s166 + $0x10] sm:$0xff]
        %v210 = vld [vmem:[%s166 + $0x18] sm:$0xff]
        %v211 = vld [vmem:[%s166 + $0x20] sm:$0xff]
        %v212 = vld [vmem:[%s166 + $0x28] sm:$0xff]
        %v213 = vld [vmem:[%s166 + $0x30] sm:$0xff]
        %v214 = vld [vmem:[%s166 + $0x38] sm:$0xff]
        %v215 = vld [vmem:[%s1] sm:$0xff]
        %v216 = vld [vmem:[%s1 + $0x8] sm:$0xff]
        %v217 = vld [vmem:[%s1 + $0x10] sm:$0xff]
        %v218 = vld [vmem:[%s1 + $0x18] sm:$0xff]
        %v219 = vld [vmem:[%s1 + $0x20] sm:$0xff]
        %v220 = vld [vmem:[%s1 + $0x28] sm:$0xff]
        %v221 = vld [vmem:[%s1 + $0x30] sm:$0xff]
        %v222 = vld [vmem:[%s1 + $0x38] sm:$0xff]
        %v223 = vld [vmem:[%s1 + $0x40] sm:$0xff]
        %v224 = vld [vmem:[%s1 + $0x48] sm:$0xff]
        %v225 = vld [vmem:[%s1 + $0x50] sm:$0xff]
        %v226 = vld [vmem:[%s1 + $0x58] sm:$0xff]
        %v227 = vld [vmem:[%s1 + $0x60] sm:$0xff]
        %v228 = vld [vmem:[%s1 + $0x68] sm:$0xff]
        %v229 = vld [vmem:[%s1 + $0x70] sm:$0xff]
        %v230 = vld [vmem:[%s1 + $0x78] sm:$0xff]
        %231 = vmatprep.subr.mxu0 0.0
        %232 = vmatpush1.msra.mxu0 %v230
        %233 = vmatprep.subr.mxu0 0.0
        %234 = vmatpush1.msra.mxu0 %v229
        %235 = vmatprep.subr.mxu0 0.0
        %236 = vmatpush1.msra.mxu0 %v228
        %237 = vmatprep.subr.mxu0 0.0
        %238 = vmatpush1.msra.mxu0 %v227
        %239 = vmatprep.subr.mxu0 0.0
        %240 = vmatpush1.msra.mxu0 %v226
        %241 = vmatprep.subr.mxu0 0.0
        %242 = vmatpush1.msra.mxu0 %v225
        %243 = vmatprep.subr.mxu0 0.0
        %244 = vmatpush1.msra.mxu0 %v224
        %245 = vmatprep.subr.mxu0 0.0
        %246 = vmatpush1.msra.mxu0 %v223
        %247 = vmatprep.subr.mxu0 0.0
        %248 = vmatpush1.msra.mxu0 %v222
        %249 = vmatprep.subr.mxu0 0.0
        %250 = vmatpush1.msra.mxu0 %v221
        %251 = vmatprep.subr.mxu0 0.0
        %252 = vmatpush1.msra.mxu0 %v220
        %253 = vmatprep.subr.mxu0 0.0
        %254 = vmatpush1.msra.mxu0 %v219
        %255 = vmatprep.subr.mxu0 0.0
        %256 = vmatpush1.msra.mxu0 %v218
        %257 = vmatprep.subr.mxu0 0.0
        %258 = vmatpush1.msra.mxu0 %v217
        %259 = vmatprep.subr.mxu0 0.0
        %260 = vmatpush1.msra.mxu0 %v216
        %261 = vmatprep.subr.mxu0 0.0
        %262 = vmatpush1.msra.mxu0 %v215
        %263 = vmatprep.subr.mxu0 0.0
        %264 = vmatpush2.msra.mxu0 0.0
        %265 = vmatprep.subr.mxu0 0.0
        %266 = vmatpush2.msra.mxu0 0.0
        %267 = vmatprep.subr.mxu0 0.0
        %268 = vmatpush2.msra.mxu0 0.0
        %269 = vmatprep.subr.mxu0 0.0
        %270 = vmatpush2.msra.mxu0 0.0
        %271 = vmatprep.subr.mxu0 0.0
        %272 = vmatpush2.msra.mxu0 0.0
        %273 = vmatprep.subr.mxu0 0.0
        %274 = vmatpush2.msra.mxu0 0.0
        %275 = vmatprep.subr.mxu0 0.0
        %276 = vmatpush2.msra.mxu0 0.0
        %277 = vmatprep.subr.mxu0 0.0
        %278 = vmatpush2.msra.mxu0 0.0
        %279 = vmatprep.subr.mxu0 0.0
        %280 = vmatpush2.msra.mxu0 0.0
        %281 = vmatprep.subr.mxu0 0.0
        %282 = vmatpush2.msra.mxu0 0.0
        %283 = vmatprep.subr.mxu0 0.0
        %284 = vmatpush2.msra.mxu0 0.0
        %285 = vmatprep.subr.mxu0 0.0
        %286 = vmatpush2.msra.mxu0 0.0
        %287 = vmatprep.subr.mxu0 0.0
        %288 = vmatpush2.msra.mxu0 0.0
        %289 = vmatprep.subr.mxu0 0.0
        %290 = vmatpush2.msra.mxu0 0.0
        %291 = vmatprep.subr.mxu0 0.0
        %292 = vmatpush2.msra.mxu0 0.0
        %293 = vmatprep.subr.mxu0 0.0
        %294 = vmatpush2.msra.mxu0 0.0
        %295 = vmatprep.mubr.f32.mxu0 0.0
        %296 = vmatmul.mubr.f32.gmra.mxu0 %v207
        %v297 = vpop.f32.mrf.mxu0
        %v298 = vadd.f32 0.0, %v297
        %v299 = vpop.f32.mrf.mxu0
        %300 = vmatprep.mubr.f32.mxu0 0.0
        %301 = vmatmul.mubr.f32.gmra.mxu0 %v208
        %v302 = vpop.f32.mrf.mxu0
        %v303 = vadd.f32 0.0, %v302
        %v304 = vpop.f32.mrf.mxu0
        %305 = vmatprep.mubr.f32.mxu0 0.0
        %306 = vmatmul.mubr.f32.gmra.mxu0 %v209
        %v307 = vpop.f32.mrf.mxu0
        %v308 = vadd.f32 0.0, %v307
        %v309 = vpop.f32.mrf.mxu0
        %310 = vmatprep.mubr.f32.mxu0 0.0
        %311 = vmatmul.mubr.f32.gmra.mxu0 %v210
        %v312 = vpop.f32.mrf.mxu0
        %v313 = vadd.f32 0.0, %v312
        %v314 = vpop.f32.mrf.mxu0
        %315 = vmatprep.mubr.f32.mxu0 0.0
        %316 = vmatmul.mubr.f32.gmra.mxu0 %v211
        %v317 = vpop.f32.mrf.mxu0
        %v318 = vadd.f32 0.0, %v317
        %v319 = vpop.f32.mrf.mxu0
        %320 = vmatprep.mubr.f32.mxu0 0.0
        %321 = vmatmul.mubr.f32.gmra.mxu0 %v212
        %v322 = vpop.f32.mrf.mxu0
        %v323 = vadd.f32 0.0, %v322
        %v324 = vpop.f32.mrf.mxu0
        %325 = vmatprep.mubr.f32.mxu0 0.0
        %326 = vmatmul.mubr.f32.gmra.mxu0 %v213
        %v327 = vpop.f32.mrf.mxu0
        %v328 = vadd.f32 0.0, %v327
        %v329 = vpop.f32.mrf.mxu0
        %330 = vmatprep.mubr.f32.mxu0 0.0
        %331 = vmatmul.mubr.f32.gmra.mxu0 %v214
        %v332 = vpop.f32.mrf.mxu0
        %v333 = vadd.f32 0.0, %v332
        %v334 = vpop.f32.mrf.mxu0
        %335 = vdwg.mxu0
        %vm336 = vcmask 64512
        %v337 = vsel %vm336, %v298, -inf
        %338 = vmax.xlane.f32.xlu0 %v337
        %v339 = vpop.xlane.xlu0 %338
        %v340 = vsel %vm336, %v303, -inf
        %341 = vmax.xlane.f32.xlu0 %v340
        %v342 = vpop.xlane.xlu0 %341
        %v343 = vsel %vm336, %v308, -inf
        %344 = vmax.xlane.f32.xlu0 %v343
        %v345 = vpop.xlane.xlu0 %344
        %v346 = vsel %vm336, %v313, -inf
        %347 = vmax.xlane.f32.xlu0 %v346
        %v348 = vpop.xlane.xlu0 %347
        %v349 = vsel %vm336, %v318, -inf
        %350 = vmax.xlane.f32.xlu0 %v349
        %v351 = vpop.xlane.xlu0 %350
        %v352 = vsel %vm336, %v323, -inf
        %353 = vmax.xlane.f32.xlu0 %v352
        %v354 = vpop.xlane.xlu0 %353
        %v355 = vsel %vm336, %v328, -inf
        %356 = vmax.xlane.f32.xlu0 %v355
        %v357 = vpop.xlane.xlu0 %356
        %v358 = vsel %vm336, %v333, -inf
        %359 = vmax.xlane.f32.xlu0 %v358
        %v360 = vpop.xlane.xlu0 %359
        %v361 = vsub.f32 %v298, %v339
        %v362 = vsub.f32 %v303, %v342
        %v363 = vsub.f32 %v308, %v345
        %v364 = vsub.f32 %v313, %v348
        %v365 = vsub.f32 %v318, %v351
        %v366 = vsub.f32 %v323, %v354
        %v367 = vsub.f32 %v328, %v357
        %v368 = vsub.f32 %v333, %v360
        %v369 = vmul.f32 %v361, 1.442695
        %v370 = vpow.pop %v369
        %v371 = vmul.f32 %v362, 1.442695
        %v372 = vpow.pop %v371
        %v373 = vmul.f32 %v363, 1.442695
        %v374 = vpow.pop %v373
        %v375 = vmul.f32 %v364, 1.442695
        %v376 = vpow.pop %v375
        %v377 = vmul.f32 %v365, 1.442695
        %v378 = vpow.pop %v377
        %v379 = vmul.f32 %v366, 1.442695
        %v380 = vpow.pop %v379
        %v381 = vmul.f32 %v367, 1.442695
        %v382 = vpow.pop %v381
        %v383 = vmul.f32 %v368, 1.442695
        %v384 = vpow.pop %v383
        %v385 = vsel %vm336, %v370, 0.0
        %386 = vadd.xlane.f32.xlu0 %v385
        %v387 = vpop.xlane.xlu0 %386
        %v388 = vsel %vm336, %v372, 0.0
        %389 = vadd.xlane.f32.xlu0 %v388
        %v390 = vpop.xlane.xlu0 %389
        %v391 = vsel %vm336, %v374, 0.0
        %392 = vadd.xlane.f32.xlu0 %v391
        %v393 = vpop.xlane.xlu0 %392
        %v394 = vsel %vm336, %v376, 0.0
        %395 = vadd.xlane.f32.xlu0 %v394
        %v396 = vpop.xlane.xlu0 %395
        %v397 = vsel %vm336, %v378, 0.0
        %398 = vadd.xlane.f32.xlu0 %v397
        %v399 = vpop.xlane.xlu0 %398
        %v400 = vsel %vm336, %v380, 0.0
        %401 = vadd.xlane.f32.xlu0 %v400
        %v402 = vpop.xlane.xlu0 %401
        %v403 = vsel %vm336, %v382, 0.0
        %404 = vadd.xlane.f32.xlu0 %v403
        %v405 = vpop.xlane.xlu0 %404
        %v406 = vsel %vm336, %v384, 0.0
        %407 = vadd.xlane.f32.xlu0 %v406
        %v408 = vpop.xlane.xlu0 %407
        %v409 = vrcp.pop %v387
        %v410 = vrcp.pop %v390
        %v411 = vrcp.pop %v393
        %v412 = vrcp.pop %v396
        %v413 = vrcp.pop %v399
        %v414 = vrcp.pop %v402
        %v415 = vrcp.pop %v405
        %v416 = vrcp.pop %v408
        %v417 = vlaneseq
        %v418 = vand.u32 %v417, 127
        %vm419 = vcmp.ge.f32.partialorder %v298, %v339
        %vm420 = vcmp.ge.f32.partialorder %v303, %v342
        %vm421 = vcmp.ge.f32.partialorder %v308, %v345
        %vm422 = vcmp.ge.f32.partialorder %v313, %v348
        %vm423 = vcmp.ge.f32.partialorder %v318, %v351
        %vm424 = vcmp.ge.f32.partialorder %v323, %v354
        %vm425 = vcmp.ge.f32.partialorder %v328, %v357
        %vm426 = vcmp.ge.f32.partialorder %v333, %v360
        %v427 = vsel %vm419, %v418, 8
        %v428 = vsel %vm420, %v418, 8
        %v429 = vsel %vm421, %v418, 8
        %v430 = vsel %vm422, %v418, 8
        %v431 = vsel %vm423, %v418, 8
        %v432 = vsel %vm424, %v418, 8
        %v433 = vsel %vm425, %v418, 8
        %v434 = vsel %vm426, %v418, 8
        %v435 = vsel %vm336, %v427, 2147483647
        %v436 = vand.u32 %v435, 65535
        %v437 = vshra.s32 %v435, 16
        %v438 = vcvt.s32.f32 %v436
        %v439 = vcvt.s32.f32 %v437
        %440 = vmin.xlane.f32.xlu0 %v439
        %v441 = vpop.xlane.xlu0 %440
        %vm442 = vcmp.eq.f32.partialorder %v439, %v441
        %v443 = vsel %vm442, %v438, inf
        %444 = vmin.xlane.f32.xlu0 %v443
        %v445 = vpop.xlane.xlu0 %444
        %v446 = vcvt.f32.s32 %v445
        %v447 = vcvt.f32.s32 %v441
        %v448 = vshll.u32 %v447, 16
        %v449 = vadd.s32 %v448, %v446
        %v450 = vsel %vm336, %v428, 2147483647
        %v451 = vand.u32 %v450, 65535
        %v452 = vshra.s32 %v450, 16
        %v453 = vcvt.s32.f32 %v451
        %v454 = vcvt.s32.f32 %v452
        %455 = vmin.xlane.f32.xlu0 %v454
        %v456 = vpop.xlane.xlu0 %455
        %vm457 = vcmp.eq.f32.partialorder %v454, %v456
        %v458 = vsel %vm457, %v453, inf
        %459 = vmin.xlane.f32.xlu0 %v458
        %v460 = vpop.xlane.xlu0 %459
        %v461 = vcvt.f32.s32 %v460
        %v462 = vcvt.f32.s32 %v456
        %v463 = vshll.u32 %v462, 16
        %v464 = vadd.s32 %v463, %v461
        %v465 = vsel %vm336, %v429, 2147483647
        %v466 = vand.u32 %v465, 65535
        %v467 = vshra.s32 %v465, 16
        %v468 = vcvt.s32.f32 %v466
        %v469 = vcvt.s32.f32 %v467
        %470 = vmin.xlane.f32.xlu0 %v469
        %v471 = vpop.xlane.xlu0 %470
        %vm472 = vcmp.eq.f32.partialorder %v469, %v471
        %v473 = vsel %vm472, %v468, inf
        %474 = vmin.xlane.f32.xlu0 %v473
        %v475 = vpop.xlane.xlu0 %474
        %v476 = vcvt.f32.s32 %v475
        %v477 = vcvt.f32.s32 %v471
        %v478 = vshll.u32 %v477, 16
        %v479 = vadd.s32 %v478, %v476
        %v480 = vsel %vm336, %v430, 2147483647
        %v481 = vand.u32 %v480, 65535
        %v482 = vshra.s32 %v480, 16
        %v483 = vcvt.s32.f32 %v481
        %v484 = vcvt.s32.f32 %v482
        %485 = vmin.xlane.f32.xlu0 %v484
        %v486 = vpop.xlane.xlu0 %485
        %vm487 = vcmp.eq.f32.partialorder %v484, %v486
        %v488 = vsel %vm487, %v483, inf
        %489 = vmin.xlane.f32.xlu0 %v488
        %v490 = vpop.xlane.xlu0 %489
        %v491 = vcvt.f32.s32 %v490
        %v492 = vcvt.f32.s32 %v486
        %v493 = vshll.u32 %v492, 16
        %v494 = vadd.s32 %v493, %v491
        %v495 = vsel %vm336, %v431, 2147483647
        %v496 = vand.u32 %v495, 65535
        %v497 = vshra.s32 %v495, 16
        %v498 = vcvt.s32.f32 %v496
        %v499 = vcvt.s32.f32 %v497
        %500 = vmin.xlane.f32.xlu0 %v499
        %v501 = vpop.xlane.xlu0 %500
        %vm502 = vcmp.eq.f32.partialorder %v499, %v501
        %v503 = vsel %vm502, %v498, inf
        %504 = vmin.xlane.f32.xlu0 %v503
        %v505 = vpop.xlane.xlu0 %504
        %v506 = vcvt.f32.s32 %v505
        %v507 = vcvt.f32.s32 %v501
        %v508 = vshll.u32 %v507, 16
        %v509 = vadd.s32 %v508, %v506
        %v510 = vsel %vm336, %v432, 2147483647
        %v511 = vand.u32 %v510, 65535
        %v512 = vshra.s32 %v510, 16
        %v513 = vcvt.s32.f32 %v511
        %v514 = vcvt.s32.f32 %v512
        %515 = vmin.xlane.f32.xlu0 %v514
        %v516 = vpop.xlane.xlu0 %515
        %vm517 = vcmp.eq.f32.partialorder %v514, %v516
        %v518 = vsel %vm517, %v513, inf
        %519 = vmin.xlane.f32.xlu0 %v518
        %v520 = vpop.xlane.xlu0 %519
        %v521 = vcvt.f32.s32 %v520
        %v522 = vcvt.f32.s32 %v516
        %v523 = vshll.u32 %v522, 16
        %v524 = vadd.s32 %v523, %v521
        %v525 = vsel %vm336, %v433, 2147483647
        %v526 = vand.u32 %v525, 65535
        %v527 = vshra.s32 %v525, 16
        %v528 = vcvt.s32.f32 %v526
        %v529 = vcvt.s32.f32 %v527
        %530 = vmin.xlane.f32.xlu0 %v529
        %v531 = vpop.xlane.xlu0 %530
        %vm532 = vcmp.eq.f32.partialorder %v529, %v531
        %v533 = vsel %vm532, %v528, inf
        %534 = vmin.xlane.f32.xlu0 %v533
        %v535 = vpop.xlane.xlu0 %534
        %v536 = vcvt.f32.s32 %v535
        %v537 = vcvt.f32.s32 %v531
        %v538 = vshll.u32 %v537, 16
        %v539 = vadd.s32 %v538, %v536
        %v540 = vsel %vm336, %v434, 2147483647
        %v541 = vand.u32 %v540, 65535
        %v542 = vshra.s32 %v540, 16
        %v543 = vcvt.s32.f32 %v541
        %v544 = vcvt.s32.f32 %v542
        %545 = vmin.xlane.f32.xlu0 %v544
        %v546 = vpop.xlane.xlu0 %545
        %vm547 = vcmp.eq.f32.partialorder %v544, %v546
        %v548 = vsel %vm547, %v543, inf
        %549 = vmin.xlane.f32.xlu0 %v548
        %v550 = vpop.xlane.xlu0 %549
        %v551 = vcvt.f32.s32 %v550
        %v552 = vcvt.f32.s32 %v546
        %v553 = vshll.u32 %v552, 16
        %v554 = vadd.s32 %v553, %v551
        %vm555 = vcmp.eq.s32.totalorder %v418, %v449
        %vm556 = vcmp.eq.s32.totalorder %v418, %v464
        %vm557 = vcmp.eq.s32.totalorder %v418, %v479
        %vm558 = vcmp.eq.s32.totalorder %v418, %v494
        %vm559 = vcmp.eq.s32.totalorder %v418, %v509
        %vm560 = vcmp.eq.s32.totalorder %v418, %v524
        %vm561 = vcmp.eq.s32.totalorder %v418, %v539
        %vm562 = vcmp.eq.s32.totalorder %v418, %v554
        %v563 = vsel %vm555, %v370, 0.0
        %v564 = vsel %vm556, %v372, 0.0
        %v565 = vsel %vm557, %v374, 0.0
        %v566 = vsel %vm558, %v376, 0.0
        %v567 = vsel %vm559, %v378, 0.0
        %v568 = vsel %vm560, %v380, 0.0
        %v569 = vsel %vm561, %v382, 0.0
        %v570 = vsel %vm562, %v384, 0.0
        %v571 = vsel %vm336, %v563, 0.0
        %572 = vadd.xlane.f32.xlu0 %v571
        %v573 = vpop.xlane.xlu0 %572
        %v574 = vsel %vm336, %v564, 0.0
        %575 = vadd.xlane.f32.xlu0 %v574
        %v576 = vpop.xlane.xlu0 %575
        %v577 = vsel %vm336, %v565, 0.0
        %578 = vadd.xlane.f32.xlu0 %v577
        %v579 = vpop.xlane.xlu0 %578
        %v580 = vsel %vm336, %v566, 0.0
        %581 = vadd.xlane.f32.xlu0 %v580
        %v582 = vpop.xlane.xlu0 %581
        %v583 = vsel %vm336, %v567, 0.0
        %584 = vadd.xlane.f32.xlu0 %v583
        %v585 = vpop.xlane.xlu0 %584
        %v586 = vsel %vm336, %v568, 0.0
        %587 = vadd.xlane.f32.xlu0 %v586
        %v588 = vpop.xlane.xlu0 %587
        %v589 = vsel %vm336, %v569, 0.0
        %590 = vadd.xlane.f32.xlu0 %v589
        %v591 = vpop.xlane.xlu0 %590
        %v592 = vsel %vm336, %v570, 0.0
        %593 = vadd.xlane.f32.xlu0 %v592
        %v594 = vpop.xlane.xlu0 %593
        %v595 = vmul.f32 %v573, %v409
        %v596 = vmul.f32 %v576, %v410
        %v597 = vmul.f32 %v579, %v411
        %v598 = vmul.f32 %v582, %v412
        %v599 = vmul.f32 %v585, %v413
        %v600 = vmul.f32 %v588, %v414
        %v601 = vmul.f32 %v591, %v415
        %v602 = vmul.f32 %v594, %v416
        %vm603 = vcmp.eq.s32.totalorder %v418, 0
        %v604 = vsel %vm603, %v595, 0.0
        %v605 = vsel %vm603, %v596, 0.0
        %v606 = vsel %vm603, %v597, 0.0
        %v607 = vsel %vm603, %v598, 0.0
        %v608 = vsel %vm603, %v599, 0.0
        %v609 = vsel %vm603, %v600, 0.0
        %v610 = vsel %vm603, %v601, 0.0
        %v611 = vsel %vm603, %v602, 0.0
        %v612 = vsel %vm603, %v449, 0
        %v613 = vsel %vm603, %v464, 0
        %v614 = vsel %vm603, %v479, 0
        %v615 = vsel %vm603, %v494, 0
        %v616 = vsel %vm603, %v509, 0
        %v617 = vsel %vm603, %v524, 0
        %v618 = vsel %vm603, %v539, 0
        %v619 = vsel %vm603, %v554, 0
        %v620 = vsel %vm555, -inf, %v298
        %v621 = vsel %vm556, -inf, %v303
        %v622 = vsel %vm557, -inf, %v308
        %v623 = vsel %vm558, -inf, %v313
        %v624 = vsel %vm559, -inf, %v318
        %v625 = vsel %vm560, -inf, %v323
        %v626 = vsel %vm561, -inf, %v328
        %v627 = vsel %vm562, -inf, %v333
        %v628 = vsel %vm336, %v620, -inf
        %629 = vmax.xlane.f32.xlu0 %v628
        %v630 = vpop.xlane.xlu0 %629
        %v631 = vsel %vm336, %v621, -inf
        %632 = vmax.xlane.f32.xlu0 %v631
        %v633 = vpop.xlane.xlu0 %632
        %v634 = vsel %vm336, %v622, -inf
        %635 = vmax.xlane.f32.xlu0 %v634
        %v636 = vpop.xlane.xlu0 %635
        %v637 = vsel %vm336, %v623, -inf
        %638 = vmax.xlane.f32.xlu0 %v637
        %v639 = vpop.xlane.xlu0 %638
        %v640 = vsel %vm336, %v624, -inf
        %641 = vmax.xlane.f32.xlu0 %v640
        %v642 = vpop.xlane.xlu0 %641
        %v643 = vsel %vm336, %v625, -inf
        %644 = vmax.xlane.f32.xlu0 %v643
        %v645 = vpop.xlane.xlu0 %644
        %v646 = vsel %vm336, %v626, -inf
        %647 = vmax.xlane.f32.xlu0 %v646
        %v648 = vpop.xlane.xlu0 %647
        %v649 = vsel %vm336, %v627, -inf
        %650 = vmax.xlane.f32.xlu0 %v649
        %v651 = vpop.xlane.xlu0 %650
        %vm652 = vcmp.ge.f32.partialorder %v620, %v630
        %vm653 = vcmp.ge.f32.partialorder %v621, %v633
        %vm654 = vcmp.ge.f32.partialorder %v622, %v636
        %vm655 = vcmp.ge.f32.partialorder %v623, %v639
        %vm656 = vcmp.ge.f32.partialorder %v624, %v642
        %vm657 = vcmp.ge.f32.partialorder %v625, %v645
        %vm658 = vcmp.ge.f32.partialorder %v626, %v648
        %vm659 = vcmp.ge.f32.partialorder %v627, %v651
        %v660 = vsel %vm652, %v418, 8
        %v661 = vsel %vm653, %v418, 8
        %v662 = vsel %vm654, %v418, 8
        %v663 = vsel %vm655, %v418, 8
        %v664 = vsel %vm656, %v418, 8
        %v665 = vsel %vm657, %v418, 8
        %v666 = vsel %vm658, %v418, 8
        %v667 = vsel %vm659, %v418, 8
        %v668 = vsel %vm336, %v660, 2147483647
        %v669 = vand.u32 %v668, 65535
        %v670 = vshra.s32 %v668, 16
        %v671 = vcvt.s32.f32 %v669
        %v672 = vcvt.s32.f32 %v670
        %673 = vmin.xlane.f32.xlu0 %v672
        %v674 = vpop.xlane.xlu0 %673
        %vm675 = vcmp.eq.f32.partialorder %v672, %v674
        %v676 = vsel %vm675, %v671, inf
        %677 = vmin.xlane.f32.xlu0 %v676
        %v678 = vpop.xlane.xlu0 %677
        %v679 = vcvt.f32.s32 %v678
        %v680 = vcvt.f32.s32 %v674
        %v681 = vshll.u32 %v680, 16
        %v682 = vadd.s32 %v681, %v679
        %v683 = vsel %vm336, %v661, 2147483647
        %v684 = vand.u32 %v683, 65535
        %v685 = vshra.s32 %v683, 16
        %v686 = vcvt.s32.f32 %v684
        %v687 = vcvt.s32.f32 %v685
        %688 = vmin.xlane.f32.xlu0 %v687
        %v689 = vpop.xlane.xlu0 %688
        %vm690 = vcmp.eq.f32.partialorder %v687, %v689
        %v691 = vsel %vm690, %v686, inf
        %692 = vmin.xlane.f32.xlu0 %v691
        %v693 = vpop.xlane.xlu0 %692
        %v694 = vcvt.f32.s32 %v693
        %v695 = vcvt.f32.s32 %v689
        %v696 = vshll.u32 %v695, 16
        %v697 = vadd.s32 %v696, %v694
        %v698 = vsel %vm336, %v662, 2147483647
        %v699 = vand.u32 %v698, 65535
        %v700 = vshra.s32 %v698, 16
        %v701 = vcvt.s32.f32 %v699
        %v702 = vcvt.s32.f32 %v700
        %703 = vmin.xlane.f32.xlu0 %v702
        %v704 = vpop.xlane.xlu0 %703
        %vm705 = vcmp.eq.f32.partialorder %v702, %v704
        %v706 = vsel %vm705, %v701, inf
        %707 = vmin.xlane.f32.xlu0 %v706
        %v708 = vpop.xlane.xlu0 %707
        %v709 = vcvt.f32.s32 %v708
        %v710 = vcvt.f32.s32 %v704
        %v711 = vshll.u32 %v710, 16
        %v712 = vadd.s32 %v711, %v709
        %v713 = vsel %vm336, %v663, 2147483647
        %v714 = vand.u32 %v713, 65535
        %v715 = vshra.s32 %v713, 16
        %v716 = vcvt.s32.f32 %v714
        %v717 = vcvt.s32.f32 %v715
        %718 = vmin.xlane.f32.xlu0 %v717
        %v719 = vpop.xlane.xlu0 %718
        %vm720 = vcmp.eq.f32.partialorder %v717, %v719
        %v721 = vsel %vm720, %v716, inf
        %722 = vmin.xlane.f32.xlu0 %v721
        %v723 = vpop.xlane.xlu0 %722
        %v724 = vcvt.f32.s32 %v723
        %v725 = vcvt.f32.s32 %v719
        %v726 = vshll.u32 %v725, 16
        %v727 = vadd.s32 %v726, %v724
        %v728 = vsel %vm336, %v664, 2147483647
        %v729 = vand.u32 %v728, 65535
        %v730 = vshra.s32 %v728, 16
        %v731 = vcvt.s32.f32 %v729
        %v732 = vcvt.s32.f32 %v730
        %733 = vmin.xlane.f32.xlu0 %v732
        %v734 = vpop.xlane.xlu0 %733
        %vm735 = vcmp.eq.f32.partialorder %v732, %v734
        %v736 = vsel %vm735, %v731, inf
        %737 = vmin.xlane.f32.xlu0 %v736
        %v738 = vpop.xlane.xlu0 %737
        %v739 = vcvt.f32.s32 %v738
        %v740 = vcvt.f32.s32 %v734
        %v741 = vshll.u32 %v740, 16
        %v742 = vadd.s32 %v741, %v739
        %v743 = vsel %vm336, %v665, 2147483647
        %v744 = vand.u32 %v743, 65535
        %v745 = vshra.s32 %v743, 16
        %v746 = vcvt.s32.f32 %v744
        %v747 = vcvt.s32.f32 %v745
        %748 = vmin.xlane.f32.xlu0 %v747
        %v749 = vpop.xlane.xlu0 %748
        %vm750 = vcmp.eq.f32.partialorder %v747, %v749
        %v751 = vsel %vm750, %v746, inf
        %752 = vmin.xlane.f32.xlu0 %v751
        %v753 = vpop.xlane.xlu0 %752
        %v754 = vcvt.f32.s32 %v753
        %v755 = vcvt.f32.s32 %v749
        %v756 = vshll.u32 %v755, 16
        %v757 = vadd.s32 %v756, %v754
        %v758 = vsel %vm336, %v666, 2147483647
        %v759 = vand.u32 %v758, 65535
        %v760 = vshra.s32 %v758, 16
        %v761 = vcvt.s32.f32 %v759
        %v762 = vcvt.s32.f32 %v760
        %763 = vmin.xlane.f32.xlu0 %v762
        %v764 = vpop.xlane.xlu0 %763
        %vm765 = vcmp.eq.f32.partialorder %v762, %v764
        %v766 = vsel %vm765, %v761, inf
        %767 = vmin.xlane.f32.xlu0 %v766
        %v768 = vpop.xlane.xlu0 %767
        %v769 = vcvt.f32.s32 %v768
        %v770 = vcvt.f32.s32 %v764
        %v771 = vshll.u32 %v770, 16
        %v772 = vadd.s32 %v771, %v769
        %v773 = vsel %vm336, %v667, 2147483647
        %v774 = vand.u32 %v773, 65535
        %v775 = vshra.s32 %v773, 16
        %v776 = vcvt.s32.f32 %v774
        %v777 = vcvt.s32.f32 %v775
        %778 = vmin.xlane.f32.xlu0 %v777
        %v779 = vpop.xlane.xlu0 %778
        %vm780 = vcmp.eq.f32.partialorder %v777, %v779
        %v781 = vsel %vm780, %v776, inf
        %782 = vmin.xlane.f32.xlu0 %v781
        %v783 = vpop.xlane.xlu0 %782
        %v784 = vcvt.f32.s32 %v783
        %v785 = vcvt.f32.s32 %v779
        %v786 = vshll.u32 %v785, 16
        %v787 = vadd.s32 %v786, %v784
        %vm788 = vcmp.eq.s32.totalorder %v418, %v682
        %vm789 = vcmp.eq.s32.totalorder %v418, %v697
        %vm790 = vcmp.eq.s32.totalorder %v418, %v712
        %vm791 = vcmp.eq.s32.totalorder %v418, %v727
        %vm792 = vcmp.eq.s32.totalorder %v418, %v742
        %vm793 = vcmp.eq.s32.totalorder %v418, %v757
        %vm794 = vcmp.eq.s32.totalorder %v418, %v772
        %vm795 = vcmp.eq.s32.totalorder %v418, %v787
        %v796 = vsel %vm788, %v370, 0.0
        %v797 = vsel %vm789, %v372, 0.0
        %v798 = vsel %vm790, %v374, 0.0
        %v799 = vsel %vm791, %v376, 0.0
        %v800 = vsel %vm792, %v378, 0.0
        %v801 = vsel %vm793, %v380, 0.0
        %v802 = vsel %vm794, %v382, 0.0
        %v803 = vsel %vm795, %v384, 0.0
        %v804 = vsel %vm336, %v796, 0.0
        %805 = vadd.xlane.f32.xlu0 %v804
        %v806 = vpop.xlane.xlu0 %805
        %v807 = vsel %vm336, %v797, 0.0
        %808 = vadd.xlane.f32.xlu0 %v807
        %v809 = vpop.xlane.xlu0 %808
        %v810 = vsel %vm336, %v798, 0.0
        %811 = vadd.xlane.f32.xlu0 %v810
        %v812 = vpop.xlane.xlu0 %811
        %v813 = vsel %vm336, %v799, 0.0
        %814 = vadd.xlane.f32.xlu0 %v813
        %v815 = vpop.xlane.xlu0 %814
        %v816 = vsel %vm336, %v800, 0.0
        %817 = vadd.xlane.f32.xlu0 %v816
        %v818 = vpop.xlane.xlu0 %817
        %v819 = vsel %vm336, %v801, 0.0
        %820 = vadd.xlane.f32.xlu0 %v819
        %v821 = vpop.xlane.xlu0 %820
        %v822 = vsel %vm336, %v802, 0.0
        %823 = vadd.xlane.f32.xlu0 %v822
        %v824 = vpop.xlane.xlu0 %823
        %v825 = vsel %vm336, %v803, 0.0
        %826 = vadd.xlane.f32.xlu0 %v825
        %v827 = vpop.xlane.xlu0 %826
        %v828 = vmul.f32 %v806, %v409
        %v829 = vmul.f32 %v809, %v410
        %v830 = vmul.f32 %v812, %v411
        %v831 = vmul.f32 %v815, %v412
        %v832 = vmul.f32 %v818, %v413
        %v833 = vmul.f32 %v821, %v414
        %v834 = vmul.f32 %v824, %v415
        %v835 = vmul.f32 %v827, %v416
        %vm836 = vcmp.eq.s32.totalorder %v418, 1
        %v837 = vsel %vm836, %v828, %v604
        %v838 = vsel %vm836, %v829, %v605
        %v839 = vsel %vm836, %v830, %v606
        %v840 = vsel %vm836, %v831, %v607
        %v841 = vsel %vm836, %v832, %v608
        %v842 = vsel %vm836, %v833, %v609
        %v843 = vsel %vm836, %v834, %v610
        %v844 = vsel %vm836, %v835, %v611
        %v845 = vsel %vm836, %v682, %v612
        %v846 = vsel %vm836, %v697, %v613
        %v847 = vsel %vm836, %v712, %v614
        %v848 = vsel %vm836, %v727, %v615
        %v849 = vsel %vm836, %v742, %v616
        %v850 = vsel %vm836, %v757, %v617
        %v851 = vsel %vm836, %v772, %v618
        %v852 = vsel %vm836, %v787, %v619
        %vm853 = vcmask 15360
        %854 = vst.msk [vmem:[%s199] sm:$0xff] %vm853, %v837
        %855 = vst.msk [vmem:[%s199 + $0x8] sm:$0xff] %vm853, %v838
        %856 = vst.msk [vmem:[%s199 + $0x10] sm:$0xff] %vm853, %v839
        %857 = vst.msk [vmem:[%s199 + $0x18] sm:$0xff] %vm853, %v840
        %858 = vst.msk [vmem:[%s199 + $0x20] sm:$0xff] %vm853, %v841
        %859 = vst.msk [vmem:[%s199 + $0x28] sm:$0xff] %vm853, %v842
        %860 = vst.msk [vmem:[%s199 + $0x30] sm:$0xff] %vm853, %v843
        %861 = vst.msk [vmem:[%s199 + $0x38] sm:$0xff] %vm853, %v844
        %862 = vst.msk [vmem:[%s205] sm:$0xff] %vm853, %v845
        %863 = vst.msk [vmem:[%s205 + $0x8] sm:$0xff] %vm853, %v846
        %864 = vst.msk [vmem:[%s205 + $0x10] sm:$0xff] %vm853, %v847
        %865 = vst.msk [vmem:[%s205 + $0x18] sm:$0xff] %vm853, %v848
        %866 = vst.msk [vmem:[%s205 + $0x20] sm:$0xff] %vm853, %v849
        %867 = vst.msk [vmem:[%s205 + $0x28] sm:$0xff] %vm853, %v850
        %868 = vst.msk [vmem:[%s205 + $0x30] sm:$0xff] %vm853, %v851
        %869 = vst.msk [vmem:[%s205 + $0x38] sm:$0xff] %vm853, %v852
        %s870 = smul.u32 8, %s18
        %p871 = scmp.lt.s32.totalorder %s870, 23
        %s872 = scalar_select %p871, %s870, 23
        %s873 = smul.addr %s872, 8
        %s874 = scalar_lea.vmem %s2, %s873
        %s875 = smul.u32 8, %s18
        %p876 = scmp.lt.s32.totalorder %s875, 23
        %s877 = scalar_select %p876, %s875, 23
        %s878 = smul.addr %s877, 8
        %s879 = scalar_lea.vmem %s3, %s878
        // Predicated region
        $region33: #{tpu_custom_call.1} parent=27 // pred_check
          %p880 = pneg %p83
        $region34: #{tpu_custom_call.1} parent=27 // pred_check_branch
          %882 = sbr.rel (%p880) target = $region36
        $region35: #{tpu_custom_call.1} parent=27 // pred_region
          %s883 = smul.u32 8, %s18
        $region36: #{tpu_custom_call.1} parent=27 // pred_fallthru
          _
        // Predicated region
        $region37: #{tpu_custom_call.1} parent=27 // pred_check
          %p884 = pneg %p109
        $region38: #{tpu_custom_call.1} parent=27 // pred_check_branch
          %886 = sbr.rel (%p884) target = $region40
        $region39: #{tpu_custom_call.1} parent=27 // pred_region
          %s887 = smul.u32 8, %s18
        $region40: #{tpu_custom_call.1} parent=27 // pred_fallthru
          _
      $region28: #{tpu_custom_call.1} parent=5 // pred_fallthru
        _
      %p888 = scmp.le.s32.totalorder 2, %s13
      // Predicated region
      $region41: #{tpu_custom_call.1} parent=5 // pred_check
        %p889 = pneg %p888
      $region42: #{tpu_custom_call.1} parent=5 // pred_check_branch
        %891 = sbr.rel (%p889) target = $region44
      $region43: #{tpu_custom_call.1} parent=5 // pred_region
        %s892 = ssub.s32 %s13, 2
        // Predicated region
        $region45: #{tpu_custom_call.1} parent=43 // pred_check
          %p893 = pneg %p89
        $region46: #{tpu_custom_call.1} parent=43 // pred_check_branch
          %895 = sbr.rel (%p893) target = $region48
        $region47: #{tpu_custom_call.1} parent=43 // pred_region
          %s896 = smul.u32 8, %s19
          %p897 = scmp.lt.s32.totalorder %s896, 23
          %s898 = scalar_select %p897, %s896, 23
          %s899 = smul.addr %s898, 8
          %s900 = scalar_lea.vmem %s2, %s899
        $region48: #{tpu_custom_call.1} parent=43 // pred_fallthru
          _
        // Predicated region
        $region49: #{tpu_custom_call.1} parent=43 // pred_check
          %p901 = pneg %p115
        $region50: #{tpu_custom_call.1} parent=43 // pred_check_branch
          %903 = sbr.rel (%p901) target = $region52
        $region51: #{tpu_custom_call.1} parent=43 // pred_region
          %s904 = smul.u32 8, %s19
          %p905 = scmp.lt.s32.totalorder %s904, 23
          %s906 = scalar_select %p905, %s904, 23
          %s907 = smul.addr %s906, 8
          %s908 = scalar_lea.vmem %s3, %s907
        $region52: #{tpu_custom_call.1} parent=43 // pred_fallthru
          _
      $region44: #{tpu_custom_call.1} parent=5 // pred_fallthru
        _
    $region6: #{tpu_custom_call.1} parent=1 // loop_footer
      %s17 = sadd.s32 1, %s13
    $region7: #{tpu_custom_call.1} parent=1 // loop_footer_branch
      %12 = sbr.rel target = $region3
    $region8: #{tpu_custom_call.1} parent=1 // loop_exit
      _
    %909 = vsyncpa [#allocation3], 1
    %s910 = scalar_lea.sflag [#allocation3], 1
    %911 = vsyncpa %s910, 1

</llo_original>
